<compile_context>
chip_gen: v7x
topology: tpu7x:2x2x1
jax: 0.10.0
libtpu: 0.0.40
codegen_flags: <defaults>
</compile_context>

<pallas_src>
import functools

import jax
import jax.numpy as jnp
from jax.experimental import pallas as pl
from jax.experimental.pallas import tpu as pltpu


# ------------------------------- kernel ---------------------------------------

def _channel_attention_kernel(x_ref, w1_ref, w2_ref, o_ref, *, inv_hw):
    """x_ref: (Bt, C, HWp) -> x * sigmoid(2 * fc(mean_hw(x))) (same dtype)."""
    x = x_ref[...]                                            # input dtype, no slab upcast

    # Global average pool over the lane-dense spatial axis.  Zero lane-padding
    # does not bias the sum; divide by the TRUE H*W.  Accumulate in f32.
    pooled = jnp.sum(x.astype(jnp.float32), axis=-1) * inv_hw           # (Bt, C)

    # Shared FC, batched over the Bt rows on the MXU.  Both pooling branches in
    # the reference are identical, so fc(max) + fc(avg) == 2 * fc(avg).
    h = jnp.maximum(
        jnp.dot(pooled, w1_ref[...], preferred_element_type=jnp.float32), 0.0)
    att = jax.nn.sigmoid(
        2.0 * jnp.dot(h, w2_ref[...], preferred_element_type=jnp.float32))  # (Bt, C)

    # Channel gate broadcast over the spatial lanes, in the INPUT dtype so the
    # dominant elementwise pass never materializes an f32 copy of the slab.
    gate = att.astype(x.dtype)[:, :, None]                               # (Bt, C, 1)
    o_ref[...] = (x * gate).astype(o_ref.dtype)


# ------------------------------- wrapper ---------------------------------------

def channel_attention(x, w1, w2, *, vmem_budget_bytes=48 * 1024 * 1024):
    """x: (B, C, H, W); w1: (C, C//r); w2: (C//r, C)  (weights stored as (in, out))."""
    B, C, H, W = x.shape
    Cr = w1.shape[1]
    HW = H * W
    HWp = ((HW + 127) // 128) * 128                 # lane-dense guard

    x3 = x.reshape(B, C, HW)
    if HWp != HW:
        x3 = jnp.pad(x3, ((0, 0), (0, 0), (0, HWp - HW)))

    itemsize = x.dtype.itemsize
    per_batch_bytes = C * HWp * itemsize
    weight_bytes = w1.size * w1.dtype.itemsize + w2.size * w2.dtype.itemsize

    # Largest Bt whose double-buffered (in + out) blocks + resident weights fit
    # the VMEM budget (sized for v7x's 64 MiB physical VMEM; v5e/v6e have 128).
    bt_cap = max(1, int((vmem_budget_bytes - 2 * weight_bytes) // (4 * per_batch_bytes)))
    # Keep >= 2 grid steps when B >= 2 so both v7x TensorCores get work; the
    # extra step is ~0.35us on single-TC v5e/v6e — negligible.
    bt_target = max(1, min(bt_cap, max(1, B // 2)))
    # Use a divisor of B so every block is full (no partially-masked stores).
    bt = max(d for d in range(1, bt_target + 1) if B % d == 0)
    grid = (B // bt,)

    # Advisory cost: 2 matmuls (x2 folded branches) + the gating multiply.
    flops = 4 * B * C * Cr + B * C * HWp
    bytes_accessed = 2 * B * C * HWp * itemsize + weight_bytes
    transcendentals = B * C                          # sigmoid

    need = 4 * bt * per_batch_bytes + 2 * weight_bytes
    vmem_limit = int(min(vmem_budget_bytes, max(2 * need, 32 * 1024 * 1024)))

    kernel = functools.partial(_channel_attention_kernel, inv_hw=float(1.0 / HW))

    out = pl.pallas_call(
        kernel,
        out_shape=jax.ShapeDtypeStruct((B, C, HWp), x.dtype),
        grid=grid,
        in_specs=[
            pl.BlockSpec((bt, C, HWp), lambda b: (b, 0, 0)),   # batch-blocked slab
            pl.BlockSpec((C, Cr), lambda b: (0, 0)),           # weights resident
            pl.BlockSpec((Cr, C), lambda b: (0, 0)),
        ],
        out_specs=pl.BlockSpec((bt, C, HWp), lambda b: (b, 0, 0)),
        compiler_params=pltpu.CompilerParams(
            dimension_semantics=("parallel",),                 # megacore / v7x 2-TC
            vmem_limit_bytes=vmem_limit),
        cost_estimate=pl.CostEstimate(
            flops=int(flops),
            transcendentals=int(transcendentals),
            bytes_accessed=int(bytes_accessed)),
    )(x3, w1, w2)

    if HWp != HW:
        out = out[:, :, :HW]
    return out.reshape(B, C, H, W)


# --------------------------- pure-JAX reference ---------------------------------

def reference_channel_attention(x, w1, w2):
    """Literal translation of the PyTorch forward (both pools are average pools)."""
    avg = jnp.mean(x, axis=(2, 3))                             # AdaptiveAvgPool2d + flatten

    def fc(v):
        return jnp.maximum(v @ w1, 0.0) @ w2

    att = jax.nn.sigmoid(fc(avg) + fc(avg))                    # max_feats == avg_feats
    return x * att[:, :, None, None]


# ----------------------------------- main ---------------------------------------

if __name__ == "__main__":
    key = jax.random.PRNGKey(0)
    reduction_ratio = 16

    # Main check: lane-dense spatial extent (H*W = 256).
    B, C, H, W = 2, 128, 16, 16
    Cr = C // reduction_ratio
    k0, k1, k2, k3 = jax.random.split(key, 4)
    x = jax.random.normal(k0, (B, C, H, W), jnp.float32)
    # Linear weights stored as (in, out) == PyTorch weight.T (bias=False).
    w1 = 0.1 * jax.random.normal(k1, (C, Cr), jnp.float32)
    w2 = 0.1 * jax.random.normal(k2, (Cr, C), jnp.float32)

    out = channel_attention(x, w1, w2)
    jax.block_until_ready(out)
    ref = reference_channel_attention(x, w1, w2)
    assert out.shape == (B, C, H, W)
    assert jnp.allclose(out, ref, atol=1e-4, rtol=1e-4)

    # Robustness check: H*W not a multiple of 128 (exercises the lane padding).
    x2 = jax.random.normal(k3, (B, C, 14, 14), jnp.float32)
    out2 = channel_attention(x2, w1, w2)
    jax.block_until_ready(out2)
    ref2 = reference_channel_attention(x2, w1, w2)
    assert out2.shape == (B, C, 14, 14)
    assert jnp.allclose(out2, ref2, atol=1e-4, rtol=1e-4)

    print("KERNEL_OK")
</pallas_src>

<mosaic_0001>
module attributes {stable_mosaic.version = 11 : i64} {
  func.func @_channel_attention_kernel(%arg0: i32, %arg1: memref<1x128x256xf32, #tpu.memory_space<vmem>>, %arg2: memref<128x8xf32, #tpu.memory_space<vmem>>, %arg3: memref<8x128xf32, #tpu.memory_space<vmem>>, %arg4: memref<1x128x256xf32, #tpu.memory_space<vmem>>) attributes {dimension_semantics = [#tpu.dimension_semantics<parallel>], iteration_bounds = array<i64: 2>, scalar_prefetch = 0 : i64, scratch_operands = 0 : i64, tpu.core_type = #tpu.core_type<tc>, window_params = [{transform_indices = @transform_0, window_bounds = array<i64: 1, 128, 256>}, {pipeline_mode = #tpu.pipeline_mode<synchronous>, transform_indices = @transform_1, window_bounds = array<i64: 128, 8>}, {pipeline_mode = #tpu.pipeline_mode<synchronous>, transform_indices = @transform_2, window_bounds = array<i64: 8, 128>}, {transform_indices = @transform_3, window_bounds = array<i64: 1, 128, 256>}]} {
    %c0 = arith.constant 0 : index
    %c0_0 = arith.constant 0 : index
    %c0_1 = arith.constant 0 : index
    %0 = vector.load %arg1[%c0, %c0_0, %c0_1] : memref<1x128x256xf32, #tpu.memory_space<vmem>>, vector<1x128x256xf32>
    %cst = arith.constant dense<0.000000e+00> : vector<1x128xf32>
    %1 = vector.multi_reduction <add>, %0, %cst [2] : vector<1x128x256xf32> to vector<1x128xf32>
    %cst_2 = arith.constant 3.906250e-03 : f32
    %2 = vector.broadcast %cst_2 : f32 to vector<1x128xf32>
    %3 = arith.mulf %1, %2 : vector<1x128xf32>
    %c0_3 = arith.constant 0 : index
    %c0_4 = arith.constant 0 : index
    %4 = vector.load %arg2[%c0_3, %c0_4] : memref<128x8xf32, #tpu.memory_space<vmem>>, vector<128x8xf32>
    %cst_5 = arith.constant dense<0.000000e+00> : vector<1x8xf32>
    %5 = tpu.matmul %3, %4, %cst_5 {dimension_numbers = #tpu.dot_dimension_numbers<[1], [0], [0], [1], [0, 0, 1, 1], [], []>} : vector<1x128xf32>, vector<128x8xf32>, vector<1x8xf32> -> vector<1x8xf32>
    %cst_6 = arith.constant 0.000000e+00 : f32
    %6 = vector.broadcast %cst_6 : f32 to vector<1x8xf32>
    %7 = arith.maximumf %5, %6 : vector<1x8xf32>
    %c0_7 = arith.constant 0 : index
    %c0_8 = arith.constant 0 : index
    %8 = vector.load %arg3[%c0_7, %c0_8] : memref<8x128xf32, #tpu.memory_space<vmem>>, vector<8x128xf32>
    %cst_9 = arith.constant dense<0.000000e+00> : vector<1x128xf32>
    %9 = tpu.matmul %7, %8, %cst_9 {dimension_numbers = #tpu.dot_dimension_numbers<[1], [0], [0], [1], [0, 0, 1, 1], [], []>} : vector<1x8xf32>, vector<8x128xf32>, vector<1x128xf32> -> vector<1x128xf32>
    %cst_10 = arith.constant 2.000000e+00 : f32
    %10 = vector.broadcast %cst_10 : f32 to vector<1x128xf32>
    %11 = arith.mulf %10, %9 : vector<1x128xf32>
    %12 = arith.negf %11 : vector<1x128xf32>
    %13 = math.exp %12 : vector<1x128xf32>
    %cst_11 = arith.constant 1.000000e+00 : f32
    %14 = vector.broadcast %cst_11 : f32 to vector<1x128xf32>
    %15 = arith.addf %14, %13 : vector<1x128xf32>
    %16 = arith.divf %14, %15 : vector<1x128xf32>
    %17 = vector.shape_cast %16 : vector<1x128xf32> to vector<1x128x1xf32>
    %18 = vector.broadcast %17 : vector<1x128x1xf32> to vector<1x128x256xf32>
    %19 = arith.mulf %0, %18 : vector<1x128x256xf32>
    %c0_12 = arith.constant 0 : index
    %c0_13 = arith.constant 0 : index
    %c0_14 = arith.constant 0 : index
    %20 = vector.load %arg4[%c0_12, %c0_13, %c0_14] : memref<1x128x256xf32, #tpu.memory_space<vmem>>, vector<1x128x256xf32>
    tpu.vector_store %arg4[%c0_12, %c0_13, %c0_14], %19 {strides = array<i32>} : memref<1x128x256xf32, #tpu.memory_space<vmem>>, vector<1x128x256xf32>,
    return
  }
  func.func @transform_0(%arg0: i32) -> (i32, i32, i32) {
    %c0_i32 = arith.constant 0 : i32
    %c0_i32_0 = arith.constant 0 : i32
    %c0_i32_1 = arith.constant 0 : i32
    return %arg0, %c0_i32, %c0_i32_0 : i32, i32, i32
  }
  func.func @transform_1(%arg0: i32) -> (i32, i32) {
    %c0_i32 = arith.constant 0 : i32
    %c0_i32_0 = arith.constant 0 : i32
    %c0_i32_1 = arith.constant 0 : i32
    return %c0_i32, %c0_i32_0 : i32, i32
  }
  func.func @transform_2(%arg0: i32) -> (i32, i32) {
    %c0_i32 = arith.constant 0 : i32
    %c0_i32_0 = arith.constant 0 : i32
    %c0_i32_1 = arith.constant 0 : i32
    return %c0_i32, %c0_i32_0 : i32, i32
  }
  func.func @transform_3(%arg0: i32) -> (i32, i32, i32) {
    %c0_i32 = arith.constant 0 : i32
    %c0_i32_0 = arith.constant 0 : i32
    %c0_i32_1 = arith.constant 0 : i32
    return %arg0, %c0_i32, %c0_i32_0 : i32, i32, i32
  }
}

</mosaic_0001>

<llo_original>
// kernel: tpu_custom_call.1
$region0: #{tpu_custom_call.1}
  #allocation0 [shape = 'u32[]', space=smem, size = 0x4, offset = 0x4, fixed_abs, tag = 'smem constant byte address 0x4 - core index']
  #allocation1 [shape = 'u32[144,128]{1,0:T(1,128)}', space=vmem, size = 0x12000, scoped, tag = 'internal scratch']
  %s0 = inlined_call_operand.hbm [shape: f32[2,128,256], index: 0, kind: input, shape index: {}]
  %s1 = inlined_call_operand.vmem [shape: f32[128,8], index: 1, kind: input, shape index: {}]
  %s2 = inlined_call_operand.vmem [shape: f32[8,128], index: 2, kind: input, shape index: {}]
  %s3 = inlined_call_operand.hbm [shape: f32[2,128,256], index: 3, kind: output, shape index: {}]
  %s4 = sld [smem:[#allocation0]]
  $region49: #{tpu_custom_call.1} parent=0
    _
  %s6 = ssub.s32 1, %s4
  %s7 = scalar_select 0, %s6, %s4
  $region1: #{tpu_custom_call.1} parent=0
    #allocation2 [shape = 'u8[262144]{0}', space=vmem, size = 0x40000, scoped, tag = 'input window, operand 0']
    #allocation3 [shape = 's32[2]{0}', space=sflag, size = 0x8, scoped, tag = 'scoped memory for tpu_custom_call.1']
    #allocation4 [shape = 's32[2]{0}', space=sflag, size = 0x8, scoped, tag = 'scoped memory for tpu_custom_call.1']
    #allocation5 [shape = 'u8[262144]{0}', space=vmem, size = 0x40000, scoped, tag = 'output window, operand 0']
    %8 = vsyncpa [#allocation3], 0
    %s9 = scalar_lea.sflag [#allocation3], 1
    %10 = vsyncpa %s9, 0
    %11 = vsyncpa [#allocation4], 0
    %s12 = scalar_lea.sflag [#allocation4], 1
    %13 = vsyncpa %s12, 0
    loop: start=0, step=1, limit=4
    $region2: #{tpu_custom_call.1} parent=1 // loop_pre_header
      _
    $region3: #{tpu_custom_call.1} parent=1 // loop_header
      %s15 = sphi 0, %s19
      %p16 = scmp.ge.s32.totalorder %s15, 4
      %s25 = sphi 0, %s27
      %s28 = sphi 0, %s25
      %s29 = sphi 0, %s28
      %s45 = sphi 0, %s29
      %s49 = sphi 0, %s49
      %s51 = sphi 0, %s49
      %s52 = sphi 0, %s51
      %s66 = sphi 0, %s52
      %s70 = sphi 0, %s70
      %s72 = sphi 0, %s70
      %s73 = sphi 0, %s72
      %s87 = sphi 0, %s73
      %s93 = sphi 0, %s95
      %s96 = sphi 0, %s93
      %s97 = sphi 0, %s96
      %s113 = sphi 0, %s97
    $region4: #{tpu_custom_call.1} parent=1 // loop_header_branch
      %18 = sbr.rel (%p16) target = $region8
    $region5: #{tpu_custom_call.1} parent=1 // loop_body
      %s20 = ssub.s32 %s15, 1
      %s21 = ssub.s32 %s15, 2
      %s22 = sadd.s32 %s15, 1
      %s23 = ssub.s32 %s15, %s22
      %p24 = scmp.eq.s32.totalorder %s23, 0
      %s26 = sadd.s32 %s25, 1
      %s27 = scalar_select %p24, %s25, %s26
      %p30 = pneg %p24
      %p31 = scmp.eq.s32.totalorder %s15, 1
      %p32 = por %p30, %p31
      %p33 = scmp.ne.s32.totalorder %s25, %s28
      %p34 = scmp.eq.s32.totalorder %s15, 0
      %p35 = por %p33, %p34
      %p36 = scmp.ne.s32.totalorder %s25, %s28
      %p37 = scmp.eq.s32.totalorder %s20, 1
      %p38 = por %p36, %p37
      %p39 = scmp.ne.s32.totalorder %s28, %s29
      %p40 = scmp.eq.s32.totalorder %s20, 0
      %p41 = por %p39, %p40
      %p42 = scmp.ne.s32.totalorder %s28, %s29
      %p43 = scmp.eq.s32.totalorder %s21, 1
      %p44 = por %p42, %p43
      %p46 = scmp.ne.s32.totalorder %s29, %s45
      %p47 = scmp.eq.s32.totalorder %s21, 0
      %p48 = por %p46, %p47
      %s50 = sadd.s32 %s49, 1
      %p53 = scmp.eq.s32.totalorder %s15, 1
      %p54 = scmp.ne.s32.totalorder %s49, %s51
      %p55 = scmp.eq.s32.totalorder %s15, 0
      %p56 = por %p54, %p55
      %p57 = scmp.ne.s32.totalorder %s49, %s51
      %p58 = scmp.eq.s32.totalorder %s20, 1
      %p59 = por %p57, %p58
      %p60 = scmp.ne.s32.totalorder %s51, %s52
      %p61 = scmp.eq.s32.totalorder %s20, 0
      %p62 = por %p60, %p61
      %p63 = scmp.ne.s32.totalorder %s51, %s52
      %p64 = scmp.eq.s32.totalorder %s21, 1
      %p65 = por %p63, %p64
      %p67 = scmp.ne.s32.totalorder %s52, %s66
      %p68 = scmp.eq.s32.totalorder %s21, 0
      %p69 = por %p67, %p68
      %s71 = sadd.s32 %s70, 1
      %p74 = scmp.eq.s32.totalorder %s15, 1
      %p75 = scmp.ne.s32.totalorder %s70, %s72
      %p76 = scmp.eq.s32.totalorder %s15, 0
      %p77 = por %p75, %p76
      %p78 = scmp.ne.s32.totalorder %s70, %s72
      %p79 = scmp.eq.s32.totalorder %s20, 1
      %p80 = por %p78, %p79
      %p81 = scmp.ne.s32.totalorder %s72, %s73
      %p82 = scmp.eq.s32.totalorder %s20, 0
      %p83 = por %p81, %p82
      %p84 = scmp.ne.s32.totalorder %s72, %s73
      %p85 = scmp.eq.s32.totalorder %s21, 1
      %p86 = por %p84, %p85
      %p88 = scmp.ne.s32.totalorder %s73, %s87
      %p89 = scmp.eq.s32.totalorder %s21, 0
      %p90 = por %p88, %p89
      %s91 = ssub.s32 %s15, %s22
      %p92 = scmp.eq.s32.totalorder %s91, 0
      %s94 = sadd.s32 %s93, 1
      %s95 = scalar_select %p92, %s93, %s94
      %p98 = pneg %p92
      %p99 = scmp.eq.s32.totalorder %s15, 1
      %p100 = por %p98, %p99
      %p101 = scmp.ne.s32.totalorder %s93, %s96
      %p102 = scmp.eq.s32.totalorder %s15, 0
      %p103 = por %p101, %p102
      %p104 = scmp.ne.s32.totalorder %s93, %s96
      %p105 = scmp.eq.s32.totalorder %s20, 1
      %p106 = por %p104, %p105
      %p107 = scmp.ne.s32.totalorder %s96, %s97
      %p108 = scmp.eq.s32.totalorder %s20, 0
      %p109 = por %p107, %p108
      %p110 = scmp.ne.s32.totalorder %s96, %s97
      %p111 = scmp.eq.s32.totalorder %s21, 1
      %p112 = por %p110, %p111
      %p114 = scmp.ne.s32.totalorder %s97, %s113
      %p115 = scmp.eq.s32.totalorder %s21, 0
      %p116 = por %p114, %p115
      %p117 = scmp.le.s32.totalorder 1, %s15
      %p118 = scmp.lt.s32.totalorder %s15, 3
      %p119 = pnand %p117, %p118
      %p120 = pneg %p119
      // Predicated region
      $region9: #{tpu_custom_call.1} parent=5 // pred_check
        _
      $region10: #{tpu_custom_call.1} parent=5 // pred_check_branch
        %122 = sbr.rel (%p119) target = $region12
      $region11: #{tpu_custom_call.1} parent=5 // pred_region
        %s123 = ssub.s32 %s15, 1
        // Predicated region
        $region13: #{tpu_custom_call.1} parent=11 // pred_check
          %p124 = pneg %p62
        $region14: #{tpu_custom_call.1} parent=11 // pred_check_branch
          %126 = sbr.rel (%p124) target = $region16
        $region15: #{tpu_custom_call.1} parent=11 // pred_region
          _
        $region16: #{tpu_custom_call.1} parent=11 // pred_fallthru
          _
        // Predicated region
        $region17: #{tpu_custom_call.1} parent=11 // pred_check
          %p127 = pneg %p83
        $region18: #{tpu_custom_call.1} parent=11 // pred_check_branch
          %129 = sbr.rel (%p127) target = $region20
        $region19: #{tpu_custom_call.1} parent=11 // pred_region
          _
        $region20: #{tpu_custom_call.1} parent=11 // pred_fallthru
          _
      $region12: #{tpu_custom_call.1} parent=5 // pred_fallthru
        _
      %p130 = scmp.lt.s32.totalorder %s15, 2
      // Predicated region
      $region21: #{tpu_custom_call.1} parent=5 // pred_check
        %p131 = pneg %p130
      $region22: #{tpu_custom_call.1} parent=5 // pred_check_branch
        %133 = sbr.rel (%p131) target = $region24
      $region23: #{tpu_custom_call.1} parent=5 // pred_region
        // Predicated region
        $region25: #{tpu_custom_call.1} parent=23 // pred_check
          %p134 = pneg %p35
        $region26: #{tpu_custom_call.1} parent=23 // pred_check_branch
          %136 = sbr.rel (%p134) target = $region28
        $region27: #{tpu_custom_call.1} parent=23 // pred_region
          %s137 = sand.u32 %s25, 1
          %s138 = scalar_lea.sflag [#allocation3], %s137
          %s139 = sand.u32 %s25, 1
          %s140 = smul.addr %s139, 256
          %s141 = scalar_lea.vmem [#allocation2], %s140
          %s143 = ssub.s32 4096, 4096
          %144 = vsyncadd %s138, %s143
          %s145 = smul.addr %s15, 32
          %s146 = smul.addr %s145, 128
          %s147 = scalar_lea.hbm %s0, %s146
          %s148 = sshll.u32 %s141, 4
          %s149 = int_to_ptr.vmem [resolvable:$true] %s148
          %154 = dma.hbm_to_vmem [thread:$0]  %s147, 4096, %s149, %s138, 256, 256, 16
        $region28: #{tpu_custom_call.1} parent=23 // pred_fallthru
          _
      $region24: #{tpu_custom_call.1} parent=5 // pred_fallthru
        _
      %p155 = scmp.le.s32.totalorder 1, %s15
      %p156 = scmp.lt.s32.totalorder %s15, 3
      %p157 = pnand %p155, %p156
      %p158 = pneg %p157
      // Predicated region
      $region29: #{tpu_custom_call.1} parent=5 // pred_check
        _
      $region30: #{tpu_custom_call.1} parent=5 // pred_check_branch
        %160 = sbr.rel (%p157) target = $region32
      $region31: #{tpu_custom_call.1} parent=5 // pred_region
        %s161 = ssub.s32 %s15, 1
        %s162 = sand.u32 %s28, 1
        %s163 = scalar_lea.sflag [#allocation3], %s162
        %s164 = sand.u32 %s28, 1
        %s165 = smul.addr %s164, 256
        %s166 = scalar_lea.vmem [#allocation2], %s165
        // Predicated region
        $region33: #{tpu_custom_call.1} parent=31 // pred_check
          %p167 = pneg %p41
        $region34: #{tpu_custom_call.1} parent=31 // pred_check_branch
          %169 = sbr.rel (%p167) target = $region36
        $region35: #{tpu_custom_call.1} parent=31 // pred_region
          %170 = dma.done %s163, 4096
        $region36: #{tpu_custom_call.1} parent=31 // pred_fallthru
          _
        %s171 = sand.u32 %s28, 1
        %s172 = scalar_lea.sflag [#allocation3], %s171
        %s173 = sand.u32 %s28, 1
        %s174 = smul.addr %s173, 256
        %s175 = scalar_lea.vmem [#allocation2], %s174
        %p176 = pneg %p41
        %p177 = pneg %p38
        %p178 = pneg %p62
        %p179 = pneg %p59
        %p180 = pneg %p83
        %p181 = pneg %p80
        %p182 = pneg %p109
        %p183 = pneg %p106
        %s184 = sand.u32 %s96, 1
        %s185 = scalar_lea.sflag [#allocation4], %s184
        %s186 = sand.u32 %s96, 1
        %s187 = smul.addr %s186, 256
        %s188 = scalar_lea.vmem [#allocation5], %s187
        %v189 = vld [vmem:[%s166] sm:$0xff]
        %v190 = vld [vmem:[%s166 + $0x8] sm:$0xff]
        %v191 = vld [vmem:[%s166 + $0x10] sm:$0xff]
        %v192 = vld [vmem:[%s166 + $0x18] sm:$0xff]
        %v193 = vld [vmem:[%s166 + $0x20] sm:$0xff]
        %v194 = vld [vmem:[%s166 + $0x28] sm:$0xff]
        %v195 = vld [vmem:[%s166 + $0x30] sm:$0xff]
        %v196 = vld [vmem:[%s166 + $0x38] sm:$0xff]
        %v197 = vld [vmem:[%s166 + $0x40] sm:$0xff]
        %v198 = vld [vmem:[%s166 + $0x48] sm:$0xff]
        %v199 = vld [vmem:[%s166 + $0x50] sm:$0xff]
        %v200 = vld [vmem:[%s166 + $0x58] sm:$0xff]
        %v201 = vld [vmem:[%s166 + $0x60] sm:$0xff]
        %v202 = vld [vmem:[%s166 + $0x68] sm:$0xff]
        %v203 = vld [vmem:[%s166 + $0x70] sm:$0xff]
        %v204 = vld [vmem:[%s166 + $0x78] sm:$0xff]
        %v205 = vld [vmem:[%s166 + $0x80] sm:$0xff]
        %v206 = vld [vmem:[%s166 + $0x88] sm:$0xff]
        %v207 = vld [vmem:[%s166 + $0x90] sm:$0xff]
        %v208 = vld [vmem:[%s166 + $0x98] sm:$0xff]
        %v209 = vld [vmem:[%s166 + $0xa0] sm:$0xff]
        %v210 = vld [vmem:[%s166 + $0xa8] sm:$0xff]
        %v211 = vld [vmem:[%s166 + $0xb0] sm:$0xff]
        %v212 = vld [vmem:[%s166 + $0xb8] sm:$0xff]
        %v213 = vld [vmem:[%s166 + $0xc0] sm:$0xff]
        %v214 = vld [vmem:[%s166 + $0xc8] sm:$0xff]
        %v215 = vld [vmem:[%s166 + $0xd0] sm:$0xff]
        %v216 = vld [vmem:[%s166 + $0xd8] sm:$0xff]
        %v217 = vld [vmem:[%s166 + $0xe0] sm:$0xff]
        %v218 = vld [vmem:[%s166 + $0xe8] sm:$0xff]
        %v219 = vld [vmem:[%s166 + $0xf0] sm:$0xff]
        %v220 = vld [vmem:[%s166 + $0xf8] sm:$0xff]
        %v221 = vadd.f32 %v189, %v190
        %222 = vadd.xlane.f32.xlu0 %v221
        %v223 = vpop.xlane.xlu0 %222
        %v224 = vadd.f32 %v191, %v192
        %225 = vadd.xlane.f32.xlu0 %v224
        %v226 = vpop.xlane.xlu0 %225
        %v227 = vadd.f32 %v193, %v194
        %228 = vadd.xlane.f32.xlu0 %v227
        %v229 = vpop.xlane.xlu0 %228
        %v230 = vadd.f32 %v195, %v196
        %231 = vadd.xlane.f32.xlu0 %v230
        %v232 = vpop.xlane.xlu0 %231
        %v233 = vadd.f32 %v197, %v198
        %234 = vadd.xlane.f32.xlu0 %v233
        %v235 = vpop.xlane.xlu0 %234
        %v236 = vadd.f32 %v199, %v200
        %237 = vadd.xlane.f32.xlu0 %v236
        %v238 = vpop.xlane.xlu0 %237
        %v239 = vadd.f32 %v201, %v202
        %240 = vadd.xlane.f32.xlu0 %v239
        %v241 = vpop.xlane.xlu0 %240
        %v242 = vadd.f32 %v203, %v204
        %243 = vadd.xlane.f32.xlu0 %v242
        %v244 = vpop.xlane.xlu0 %243
        %v245 = vadd.f32 %v205, %v206
        %246 = vadd.xlane.f32.xlu0 %v245
        %v247 = vpop.xlane.xlu0 %246
        %v248 = vadd.f32 %v207, %v208
        %249 = vadd.xlane.f32.xlu0 %v248
        %v250 = vpop.xlane.xlu0 %249
        %v251 = vadd.f32 %v209, %v210
        %252 = vadd.xlane.f32.xlu0 %v251
        %v253 = vpop.xlane.xlu0 %252
        %v254 = vadd.f32 %v211, %v212
        %255 = vadd.xlane.f32.xlu0 %v254
        %v256 = vpop.xlane.xlu0 %255
        %v257 = vadd.f32 %v213, %v214
        %258 = vadd.xlane.f32.xlu0 %v257
        %v259 = vpop.xlane.xlu0 %258
        %v260 = vadd.f32 %v215, %v216
        %261 = vadd.xlane.f32.xlu0 %v260
        %v262 = vpop.xlane.xlu0 %261
        %v263 = vadd.f32 %v217, %v218
        %264 = vadd.xlane.f32.xlu0 %v263
        %v265 = vpop.xlane.xlu0 %264
        %v266 = vadd.f32 %v219, %v220
        %267 = vadd.xlane.f32.xlu0 %v266
        %v268 = vpop.xlane.xlu0 %267
        %v269 = vmul.f32 %v223, 0.00390625
        %v270 = vmul.f32 %v226, 0.00390625
        %v271 = vmul.f32 %v229, 0.00390625
        %v272 = vmul.f32 %v232, 0.00390625
        %v273 = vmul.f32 %v235, 0.00390625
        %v274 = vmul.f32 %v238, 0.00390625
        %v275 = vmul.f32 %v241, 0.00390625
        %v276 = vmul.f32 %v244, 0.00390625
        %v277 = vmul.f32 %v247, 0.00390625
        %v278 = vmul.f32 %v250, 0.00390625
        %v279 = vmul.f32 %v253, 0.00390625
        %v280 = vmul.f32 %v256, 0.00390625
        %v281 = vmul.f32 %v259, 0.00390625
        %v282 = vmul.f32 %v262, 0.00390625
        %v283 = vmul.f32 %v265, 0.00390625
        %v284 = vmul.f32 %v268, 0.00390625
        %v285 = vld [vmem:[%s1] sm:$0xff]
        %v286 = vld [vmem:[%s1 + $0x8] sm:$0xff]
        %v287 = vld [vmem:[%s1 + $0x10] sm:$0xff]
        %v288 = vld [vmem:[%s1 + $0x18] sm:$0xff]
        %v289 = vld [vmem:[%s1 + $0x20] sm:$0xff]
        %v290 = vld [vmem:[%s1 + $0x28] sm:$0xff]
        %v291 = vld [vmem:[%s1 + $0x30] sm:$0xff]
        %v292 = vld [vmem:[%s1 + $0x38] sm:$0xff]
        %v293 = vld [vmem:[%s1 + $0x40] sm:$0xff]
        %v294 = vld [vmem:[%s1 + $0x48] sm:$0xff]
        %v295 = vld [vmem:[%s1 + $0x50] sm:$0xff]
        %v296 = vld [vmem:[%s1 + $0x58] sm:$0xff]
        %v297 = vld [vmem:[%s1 + $0x60] sm:$0xff]
        %v298 = vld [vmem:[%s1 + $0x68] sm:$0xff]
        %v299 = vld [vmem:[%s1 + $0x70] sm:$0xff]
        %v300 = vld [vmem:[%s1 + $0x78] sm:$0xff]
        %v317 = vlaneseq
        %v318 = vand.u32 %v317, 127
        %v319 = vlaneseq
        %v320 = vshrl.u32 %v319, 7
        %v321 = vsub.s32 %v318, %v320
        %v322 = vrot.slane %v269, %v321
        %v323 = vadd.s32 %v318, 4294967288
        %v324 = vlaneseq
        %v325 = vshrl.u32 %v324, 7
        %v326 = vsub.s32 %v323, %v325
        %v327 = vrot.slane %v270, %v326
        %vm328 = vcmask 130112
        %v329 = vsel %vm328, %v327, %v322
        %v330 = vadd.s32 %v318, 4294967280
        %v331 = vlaneseq
        %v332 = vshrl.u32 %v331, 7
        %v333 = vsub.s32 %v330, %v332
        %v334 = vrot.slane %v271, %v333
        %vm335 = vcmask 195712
        %v336 = vsel %vm335, %v334, %v329
        %v337 = vadd.s32 %v318, 4294967272
        %v338 = vlaneseq
        %v339 = vshrl.u32 %v338, 7
        %v340 = vsub.s32 %v337, %v339
        %v341 = vrot.slane %v272, %v340
        %vm342 = vcmask 261312
        %v343 = vsel %vm342, %v341, %v336
        %v344 = vadd.s32 %v318, 4294967264
        %v345 = vlaneseq
        %v346 = vshrl.u32 %v345, 7
        %v347 = vsub.s32 %v344, %v346
        %v348 = vrot.slane %v273, %v347
        %vm349 = vcmask 326912
        %v350 = vsel %vm349, %v348, %v343
        %v351 = vadd.s32 %v318, 4294967256
        %v352 = vlaneseq
        %v353 = vshrl.u32 %v352, 7
        %v354 = vsub.s32 %v351, %v353
        %v355 = vrot.slane %v274, %v354
        %vm356 = vcmask 392512
        %v357 = vsel %vm356, %v355, %v350
        %v358 = vadd.s32 %v318, 4294967248
        %v359 = vlaneseq
        %v360 = vshrl.u32 %v359, 7
        %v361 = vsub.s32 %v358, %v360
        %v362 = vrot.slane %v275, %v361
        %vm363 = vcmask 458112
        %v364 = vsel %vm363, %v362, %v357
        %v365 = vadd.s32 %v318, 4294967240
        %v366 = vlaneseq
        %v367 = vshrl.u32 %v366, 7
        %v368 = vsub.s32 %v365, %v367
        %v369 = vrot.slane %v276, %v368
        %vm370 = vcmask 523712
        %v371 = vsel %vm370, %v369, %v364
        %v372 = vadd.s32 %v318, 4294967232
        %v373 = vlaneseq
        %v374 = vshrl.u32 %v373, 7
        %v375 = vsub.s32 %v372, %v374
        %v376 = vrot.slane %v277, %v375
        %vm377 = vcmask 589312
        %v378 = vsel %vm377, %v376, %v371
        %v379 = vadd.s32 %v318, 4294967224
        %v380 = vlaneseq
        %v381 = vshrl.u32 %v380, 7
        %v382 = vsub.s32 %v379, %v381
        %v383 = vrot.slane %v278, %v382
        %vm384 = vcmask 654912
        %v385 = vsel %vm384, %v383, %v378
        %v386 = vadd.s32 %v318, 4294967216
        %v387 = vlaneseq
        %v388 = vshrl.u32 %v387, 7
        %v389 = vsub.s32 %v386, %v388
        %v390 = vrot.slane %v279, %v389
        %vm391 = vcmask 720512
        %v392 = vsel %vm391, %v390, %v385
        %v393 = vadd.s32 %v318, 4294967208
        %v394 = vlaneseq
        %v395 = vshrl.u32 %v394, 7
        %v396 = vsub.s32 %v393, %v395
        %v397 = vrot.slane %v280, %v396
        %vm398 = vcmask 786112
        %v399 = vsel %vm398, %v397, %v392
        %v400 = vadd.s32 %v318, 4294967200
        %v401 = vlaneseq
        %v402 = vshrl.u32 %v401, 7
        %v403 = vsub.s32 %v400, %v402
        %v404 = vrot.slane %v281, %v403
        %vm405 = vcmask 851712
        %v406 = vsel %vm405, %v404, %v399
        %v407 = vadd.s32 %v318, 4294967192
        %v408 = vlaneseq
        %v409 = vshrl.u32 %v408, 7
        %v410 = vsub.s32 %v407, %v409
        %v411 = vrot.slane %v282, %v410
        %vm412 = vcmask 917312
        %v413 = vsel %vm412, %v411, %v406
        %v414 = vadd.s32 %v318, 4294967184
        %v415 = vlaneseq
        %v416 = vshrl.u32 %v415, 7
        %v417 = vsub.s32 %v414, %v416
        %v418 = vrot.slane %v283, %v417
        %vm419 = vcmask 982912
        %v420 = vsel %vm419, %v418, %v413
        %v421 = vadd.s32 %v318, 4294967176
        %v422 = vlaneseq
        %v423 = vshrl.u32 %v422, 7
        %v424 = vsub.s32 %v421, %v423
        %v425 = vrot.slane %v284, %v424
        %vm426 = vcmask 1048512
        %v427 = vsel %vm426, %v425, %v420
        %429 = vmatprep.subr.mxu0 0.0
        %430 = vmatpush1.msra.mxu0 %v285
        %431 = vmatprep.subr.mxu0 0.0
        %432 = vmatpush1.msra.mxu0 %v286
        %433 = vmatprep.subr.mxu0 0.0
        %434 = vmatpush1.msra.mxu0 %v287
        %435 = vmatprep.subr.mxu0 0.0
        %436 = vmatpush1.msra.mxu0 %v288
        %437 = vmatprep.subr.mxu0 0.0
        %438 = vmatpush1.msra.mxu0 %v289
        %439 = vmatprep.subr.mxu0 0.0
        %440 = vmatpush1.msra.mxu0 %v290
        %441 = vmatprep.subr.mxu0 0.0
        %442 = vmatpush1.msra.mxu0 %v291
        %443 = vmatprep.subr.mxu0 0.0
        %444 = vmatpush1.msra.mxu0 %v292
        %445 = vmatprep.subr.mxu0 0.0
        %446 = vmatpush1.msra.mxu0 %v293
        %447 = vmatprep.subr.mxu0 0.0
        %448 = vmatpush1.msra.mxu0 %v294
        %449 = vmatprep.subr.mxu0 0.0
        %450 = vmatpush1.msra.mxu0 %v295
        %451 = vmatprep.subr.mxu0 0.0
        %452 = vmatpush1.msra.mxu0 %v296
        %453 = vmatprep.subr.mxu0 0.0
        %454 = vmatpush1.msra.mxu0 %v297
        %455 = vmatprep.subr.mxu0 0.0
        %456 = vmatpush1.msra.mxu0 %v298
        %457 = vmatprep.subr.mxu0 0.0
        %458 = vmatpush1.msra.mxu0 %v299
        %459 = vmatprep.subr.mxu0 0.0
        %460 = vmatpush1.msra.mxu0 %v300
        %461 = vmatprep.subr.mxu0 0.0
        %462 = vmatpush1.msra.mxu0 0.0
        %463 = vmatprep.subr.mxu0 0.0
        %464 = vmatpush1.msra.mxu0 0.0
        %465 = vmatprep.subr.mxu0 0.0
        %466 = vmatpush1.msra.mxu0 0.0
        %467 = vmatprep.subr.mxu0 0.0
        %468 = vmatpush1.msra.mxu0 0.0
        %469 = vmatprep.subr.mxu0 0.0
        %470 = vmatpush1.msra.mxu0 0.0
        %471 = vmatprep.subr.mxu0 0.0
        %472 = vmatpush1.msra.mxu0 0.0
        %473 = vmatprep.subr.mxu0 0.0
        %474 = vmatpush1.msra.mxu0 0.0
        %475 = vmatprep.subr.mxu0 0.0
        %476 = vmatpush1.msra.mxu0 0.0
        %477 = vmatprep.subr.mxu0 0.0
        %478 = vmatpush1.msra.mxu0 0.0
        %479 = vmatprep.subr.mxu0 0.0
        %480 = vmatpush1.msra.mxu0 0.0
        %481 = vmatprep.subr.mxu0 0.0
        %482 = vmatpush1.msra.mxu0 0.0
        %483 = vmatprep.subr.mxu0 0.0
        %484 = vmatpush1.msra.mxu0 0.0
        %485 = vmatprep.subr.mxu0 0.0
        %486 = vmatpush1.msra.mxu0 0.0
        %487 = vmatprep.subr.mxu0 0.0
        %488 = vmatpush1.msra.mxu0 0.0
        %489 = vmatprep.subr.mxu0 0.0
        %490 = vmatpush1.msra.mxu0 0.0
        %491 = vmatprep.subr.mxu0 0.0
        %492 = vmatpush1.msra.mxu0 0.0
        %493 = vmatprep.mubr.f32.mxu0 0.0
        %494 = vmatmul.mubr.f32.gmra.mrb[0].mxu0 %v427
        %v495 = vpop.f32.mrb[0].mxu0
        %v496 = vadd.f32 0.0, %v495
        %v497 = vpop.f32.mrb[0].mxu0
        %498 = vdwg.mxu0
        %v499 = vmax.f32 %v496, 0.0
        %v500 = vld [vmem:[%s2] sm:$0xff]
        %vm501 = vcmask 64512
        %v503 = vsel %vm501, %v499, 0
        %505 = vmatprep.subr.mxu0 0.0
        %506 = vmatpush1.msra.mxu0 %v500
        %507 = vmatprep.subr.mxu0 0.0
        %508 = vmatpush1.msra.mxu0 0.0
        %509 = vmatprep.subr.mxu0 0.0
        %510 = vmatpush1.msra.mxu0 0.0
        %511 = vmatprep.subr.mxu0 0.0
        %512 = vmatpush1.msra.mxu0 0.0
        %513 = vmatprep.subr.mxu0 0.0
        %514 = vmatpush1.msra.mxu0 0.0
        %515 = vmatprep.subr.mxu0 0.0
        %516 = vmatpush1.msra.mxu0 0.0
        %517 = vmatprep.subr.mxu0 0.0
        %518 = vmatpush1.msra.mxu0 0.0
        %519 = vmatprep.subr.mxu0 0.0
        %520 = vmatpush1.msra.mxu0 0.0
        %521 = vmatprep.subr.mxu0 0.0
        %522 = vmatpush1.msra.mxu0 0.0
        %523 = vmatprep.subr.mxu0 0.0
        %524 = vmatpush1.msra.mxu0 0.0
        %525 = vmatprep.subr.mxu0 0.0
        %526 = vmatpush1.msra.mxu0 0.0
        %527 = vmatprep.subr.mxu0 0.0
        %528 = vmatpush1.msra.mxu0 0.0
        %529 = vmatprep.subr.mxu0 0.0
        %530 = vmatpush1.msra.mxu0 0.0
        %531 = vmatprep.subr.mxu0 0.0
        %532 = vmatpush1.msra.mxu0 0.0
        %533 = vmatprep.subr.mxu0 0.0
        %534 = vmatpush1.msra.mxu0 0.0
        %535 = vmatprep.subr.mxu0 0.0
        %536 = vmatpush1.msra.mxu0 0.0
        %537 = vmatprep.subr.mxu0 0.0
        %538 = vmatpush1.msra.mxu0 0.0
        %539 = vmatprep.subr.mxu0 0.0
        %540 = vmatpush1.msra.mxu0 0.0
        %541 = vmatprep.subr.mxu0 0.0
        %542 = vmatpush1.msra.mxu0 0.0
        %543 = vmatprep.subr.mxu0 0.0
        %544 = vmatpush1.msra.mxu0 0.0
        %545 = vmatprep.subr.mxu0 0.0
        %546 = vmatpush1.msra.mxu0 0.0
        %547 = vmatprep.subr.mxu0 0.0
        %548 = vmatpush1.msra.mxu0 0.0
        %549 = vmatprep.subr.mxu0 0.0
        %550 = vmatpush1.msra.mxu0 0.0
        %551 = vmatprep.subr.mxu0 0.0
        %552 = vmatpush1.msra.mxu0 0.0
        %553 = vmatprep.subr.mxu0 0.0
        %554 = vmatpush1.msra.mxu0 0.0
        %555 = vmatprep.subr.mxu0 0.0
        %556 = vmatpush1.msra.mxu0 0.0
        %557 = vmatprep.subr.mxu0 0.0
        %558 = vmatpush1.msra.mxu0 0.0
        %559 = vmatprep.subr.mxu0 0.0
        %560 = vmatpush1.msra.mxu0 0.0
        %561 = vmatprep.subr.mxu0 0.0
        %562 = vmatpush1.msra.mxu0 0.0
        %563 = vmatprep.subr.mxu0 0.0
        %564 = vmatpush1.msra.mxu0 0.0
        %565 = vmatprep.subr.mxu0 0.0
        %566 = vmatpush1.msra.mxu0 0.0
        %567 = vmatprep.subr.mxu0 0.0
        %568 = vmatpush1.msra.mxu0 0.0
        %569 = vmatprep.mubr.f32.mxu0 0.0
        %570 = vmatmul.mubr.f32.gmra.mrb[0].mxu0 %v503
        %v571 = vpop.f32.mrb[0].mxu0
        %v572 = vadd.f32 0.0, %v571
        %v573 = vpop.f32.mrb[0].mxu0
        %574 = vdwg.mxu0
        %v575 = vmul.f32 %v572, 2.0
        %v576 = vxor.u32 %v575, 2147483648
        %v577 = vmul.f32 %v576, 1.442695
        %v578 = vpow.pop %v577
        %v579 = vadd.f32 %v578, 1.0
        %v580 = vrcp.pop %v579
        %v581 = vmul.f32 1.0, %v580
        %v582 = vlaneseq
        %v583 = vshrl.u32 %v582, 7
        %v584 = vsub.s32 0, %v583
        %v585 = vrot.slane %v581, %v584
        %587 = vbcast.lane.b32.xlu0 %v585, 256
        %v588 = vpop.permute.xlu0 %587
        %s590 = sor.u32 256, 8
        %591 = vbcast.lane.b32.xlu0 %v585, %s590
        %v592 = vpop.permute.xlu0 %591
        %s594 = sor.u32 256, 16
        %595 = vbcast.lane.b32.xlu0 %v585, %s594
        %v596 = vpop.permute.xlu0 %595
        %s598 = sor.u32 256, 24
        %599 = vbcast.lane.b32.xlu0 %v585, %s598
        %v600 = vpop.permute.xlu0 %599
        %s602 = sor.u32 256, 32
        %603 = vbcast.lane.b32.xlu0 %v585, %s602
        %v604 = vpop.permute.xlu0 %603
        %s606 = sor.u32 256, 40
        %607 = vbcast.lane.b32.xlu0 %v585, %s606
        %v608 = vpop.permute.xlu0 %607
        %s610 = sor.u32 256, 48
        %611 = vbcast.lane.b32.xlu0 %v585, %s610
        %v612 = vpop.permute.xlu0 %611
        %s614 = sor.u32 256, 56
        %615 = vbcast.lane.b32.xlu0 %v585, %s614
        %v616 = vpop.permute.xlu0 %615
        %s618 = sor.u32 256, 64
        %619 = vbcast.lane.b32.xlu0 %v585, %s618
        %v620 = vpop.permute.xlu0 %619
        %s622 = sor.u32 256, 72
        %623 = vbcast.lane.b32.xlu0 %v585, %s622
        %v624 = vpop.permute.xlu0 %623
        %s626 = sor.u32 256, 80
        %627 = vbcast.lane.b32.xlu0 %v585, %s626
        %v628 = vpop.permute.xlu0 %627
        %s630 = sor.u32 256, 88
        %631 = vbcast.lane.b32.xlu0 %v585, %s630
        %v632 = vpop.permute.xlu0 %631
        %s634 = sor.u32 256, 96
        %635 = vbcast.lane.b32.xlu0 %v585, %s634
        %v636 = vpop.permute.xlu0 %635
        %s638 = sor.u32 256, 104
        %639 = vbcast.lane.b32.xlu0 %v585, %s638
        %v640 = vpop.permute.xlu0 %639
        %s642 = sor.u32 256, 112
        %643 = vbcast.lane.b32.xlu0 %v585, %s642
        %v644 = vpop.permute.xlu0 %643
        %s646 = sor.u32 256, 120
        %647 = vbcast.lane.b32.xlu0 %v585, %s646
        %v648 = vpop.permute.xlu0 %647
        %v649 = vmul.f32 %v189, %v588
        %v650 = vmul.f32 %v190, %v588
        %v651 = vmul.f32 %v191, %v592
        %v652 = vmul.f32 %v192, %v592
        %v653 = vmul.f32 %v193, %v596
        %v654 = vmul.f32 %v194, %v596
        %v655 = vmul.f32 %v195, %v600
        %v656 = vmul.f32 %v196, %v600
        %v657 = vmul.f32 %v197, %v604
        %v658 = vmul.f32 %v198, %v604
        %v659 = vmul.f32 %v199, %v608
        %v660 = vmul.f32 %v200, %v608
        %v661 = vmul.f32 %v201, %v612
        %v662 = vmul.f32 %v202, %v612
        %v663 = vmul.f32 %v203, %v616
        %v664 = vmul.f32 %v204, %v616
        %v665 = vmul.f32 %v205, %v620
        %v666 = vmul.f32 %v206, %v620
        %v667 = vmul.f32 %v207, %v624
        %v668 = vmul.f32 %v208, %v624
        %v669 = vmul.f32 %v209, %v628
        %v670 = vmul.f32 %v210, %v628
        %v671 = vmul.f32 %v211, %v632
        %v672 = vmul.f32 %v212, %v632
        %v673 = vmul.f32 %v213, %v636
        %v674 = vmul.f32 %v214, %v636
        %v675 = vmul.f32 %v215, %v640
        %v676 = vmul.f32 %v216, %v640
        %v677 = vmul.f32 %v217, %v644
        %v678 = vmul.f32 %v218, %v644
        %v679 = vmul.f32 %v219, %v648
        %v680 = vmul.f32 %v220, %v648
        %681 = vst [vmem:[%s188] sm:$0xff] %v649
        %682 = vst [vmem:[%s188 + $0x8] sm:$0xff] %v650
        %683 = vst [vmem:[%s188 + $0x10] sm:$0xff] %v651
        %684 = vst [vmem:[%s188 + $0x18] sm:$0xff] %v652
        %685 = vst [vmem:[%s188 + $0x20] sm:$0xff] %v653
        %686 = vst [vmem:[%s188 + $0x28] sm:$0xff] %v654
        %687 = vst [vmem:[%s188 + $0x30] sm:$0xff] %v655
        %688 = vst [vmem:[%s188 + $0x38] sm:$0xff] %v656
        %689 = vst [vmem:[%s188 + $0x40] sm:$0xff] %v657
        %690 = vst [vmem:[%s188 + $0x48] sm:$0xff] %v658
        %691 = vst [vmem:[%s188 + $0x50] sm:$0xff] %v659
        %692 = vst [vmem:[%s188 + $0x58] sm:$0xff] %v660
        %693 = vst [vmem:[%s188 + $0x60] sm:$0xff] %v661
        %694 = vst [vmem:[%s188 + $0x68] sm:$0xff] %v662
        %695 = vst [vmem:[%s188 + $0x70] sm:$0xff] %v663
        %696 = vst [vmem:[%s188 + $0x78] sm:$0xff] %v664
        %697 = vst [vmem:[%s188 + $0x80] sm:$0xff] %v665
        %698 = vst [vmem:[%s188 + $0x88] sm:$0xff] %v666
        %699 = vst [vmem:[%s188 + $0x90] sm:$0xff] %v667
        %700 = vst [vmem:[%s188 + $0x98] sm:$0xff] %v668
        %701 = vst [vmem:[%s188 + $0xa0] sm:$0xff] %v669
        %702 = vst [vmem:[%s188 + $0xa8] sm:$0xff] %v670
        %703 = vst [vmem:[%s188 + $0xb0] sm:$0xff] %v671
        %704 = vst [vmem:[%s188 + $0xb8] sm:$0xff] %v672
        %705 = vst [vmem:[%s188 + $0xc0] sm:$0xff] %v673
        %706 = vst [vmem:[%s188 + $0xc8] sm:$0xff] %v674
        %707 = vst [vmem:[%s188 + $0xd0] sm:$0xff] %v675
        %708 = vst [vmem:[%s188 + $0xd8] sm:$0xff] %v676
        %709 = vst [vmem:[%s188 + $0xe0] sm:$0xff] %v677
        %710 = vst [vmem:[%s188 + $0xe8] sm:$0xff] %v678
        %711 = vst [vmem:[%s188 + $0xf0] sm:$0xff] %v679
        %712 = vst [vmem:[%s188 + $0xf8] sm:$0xff] %v680
        %s713 = sand.u32 %s96, 1
        %s714 = scalar_lea.sflag [#allocation4], %s713
        %s715 = sand.u32 %s96, 1
        %s716 = smul.addr %s715, 256
        %s717 = scalar_lea.vmem [#allocation5], %s716
        // Predicated region
        $region37: #{tpu_custom_call.1} parent=31 // pred_check
          %p718 = pneg %p106
        $region38: #{tpu_custom_call.1} parent=31 // pred_check_branch
          %720 = sbr.rel (%p718) target = $region40
        $region39: #{tpu_custom_call.1} parent=31 // pred_region
          %s722 = ssub.s32 4096, 4096
          %723 = vsyncadd %s714, %s722
          %s724 = smul.addr %s20, 32
          %s725 = smul.addr %s724, 128
          %s726 = scalar_lea.hbm %s3, %s725
          %s727 = sshll.u32 %s717, 4
          %s728 = int_to_ptr.vmem [resolvable:$true] %s727
          %733 = dma.vmem_to_hbm [thread:$0]  %s728, 4096, %s726, %s714, 256, 256, 16
        $region40: #{tpu_custom_call.1} parent=31 // pred_fallthru
          _
      $region32: #{tpu_custom_call.1} parent=5 // pred_fallthru
        _
      %p734 = scmp.le.s32.totalorder 2, %s15
      // Predicated region
      $region41: #{tpu_custom_call.1} parent=5 // pred_check
        %p735 = pneg %p734
      $region42: #{tpu_custom_call.1} parent=5 // pred_check_branch
        %737 = sbr.rel (%p735) target = $region44
      $region43: #{tpu_custom_call.1} parent=5 // pred_region
        %s738 = ssub.s32 %s15, 2
        // Predicated region
        $region45: #{tpu_custom_call.1} parent=43 // pred_check
          %p739 = pneg %p112
        $region46: #{tpu_custom_call.1} parent=43 // pred_check_branch
          %741 = sbr.rel (%p739) target = $region48
        $region47: #{tpu_custom_call.1} parent=43 // pred_region
          %s742 = sand.u32 %s97, 1
          %s743 = scalar_lea.sflag [#allocation4], %s742
          %s744 = sand.u32 %s97, 1
          %s745 = smul.addr %s744, 256
          %s746 = scalar_lea.vmem [#allocation5], %s745
          %747 = dma.done %s743, 4096
        $region48: #{tpu_custom_call.1} parent=43 // pred_fallthru
          _
      $region44: #{tpu_custom_call.1} parent=5 // pred_fallthru
        _
    $region6: #{tpu_custom_call.1} parent=1 // loop_footer
      %s19 = sadd.s32 1, %s15
    $region7: #{tpu_custom_call.1} parent=1 // loop_footer_branch
      %14 = sbr.rel target = $region3
    $region8: #{tpu_custom_call.1} parent=1 // loop_exit
      _
    %748 = vsyncpa [#allocation3], 1
    %s749 = scalar_lea.sflag [#allocation3], 1
    %750 = vsyncpa %s749, 1
    %751 = vsyncpa [#allocation4], 1
    %s752 = scalar_lea.sflag [#allocation4], 1
    %753 = vsyncpa %s752, 1

</llo_original>
